<compile_context>
chip_gen: v5e
topology: v5e:2x2
jax: 0.10.0
libtpu: 0.0.40
codegen_flags: <defaults>
</compile_context>

<pallas_src>
import functools

import jax
import jax.numpy as jnp
from jax.experimental import pallas as pl
from jax.experimental.pallas import tpu as pltpu

HIDDEN = 128
LANE = 128


def _round_up(n, m):
    return ((n + m - 1) // m) * m


def generative_kernel(x_ref,
                      w1_ref, b1_ref,
                      w2_ref, b2_ref,
                      w3_ref, b3_ref,
                      w4_ref, b4_ref,
                      o_ref,
                      *, action_dim):
    """One (tb, S) batch tile -> (tb, A) softmax probabilities."""
    x = x_ref[...].astype(jnp.bfloat16)                        # cast in-kernel

    h = jnp.maximum(
        jnp.dot(x, w1_ref[...], preferred_element_type=jnp.float32)
        + b1_ref[...], 0.0)
    h = jnp.maximum(
        jnp.dot(h.astype(jnp.bfloat16), w2_ref[...],
                preferred_element_type=jnp.float32) + b2_ref[...], 0.0)
    h = jnp.maximum(
        jnp.dot(h.astype(jnp.bfloat16), w3_ref[...],
                preferred_element_type=jnp.float32) + b3_ref[...], 0.0)

    # Padded action lanes carry a -1e30 bias (baked in at prep time, W4 padded
    # columns are zero), so they get exp(...)≈0 with no in-kernel masking.
    logits = jnp.dot(h.astype(jnp.bfloat16), w4_ref[...],
                     preferred_element_type=jnp.float32) + b4_ref[...]

    # Numerically-stable, exactly-normalized softmax over the action axis.
    m = jnp.max(logits, axis=-1, keepdims=True)
    e = jnp.exp(logits - m)
    denom = jnp.sum(e, axis=-1, keepdims=True)
    probs = e / denom

    o_ref[...] = probs[:, :action_dim].astype(o_ref.dtype)


def prepare_params(params):
    """One-time parameter prep (hoisted out of the forward path):
    bf16 weights, f32 (1, out) biases, W4 zero-padded to 128 lanes and b4 padded
    with -1e30 so padded action lanes get zero probability."""
    (w1, b1), (w2, b2), (w3, b3), (w4, b4) = params
    A = int(w4.shape[1])
    A_pad = _round_up(A, LANE)

    w4_p = jnp.zeros((HIDDEN, A_pad), jnp.bfloat16).at[:, :A].set(
        w4.astype(jnp.bfloat16))
    b4_p = jnp.full((1, A_pad), -1e30, jnp.float32).at[:, :A].set(
        b4.astype(jnp.float32).reshape(1, A))

    prepared = (
        w1.astype(jnp.bfloat16), b1.astype(jnp.float32).reshape(1, HIDDEN),
        w2.astype(jnp.bfloat16), b2.astype(jnp.float32).reshape(1, HIDDEN),
        w3.astype(jnp.bfloat16), b3.astype(jnp.float32).reshape(1, HIDDEN),
        w4_p, b4_p,
    )
    return prepared, A


def generative_forward(x, prepared, action_dim, *, block_b=512):
    """x: (B, state_dim) f32; prepared: output of prepare_params."""
    B, S = x.shape
    A = action_dim
    w1, b1, w2, b2, w3, b3, w4_p, b4_p = prepared
    A_pad = w4_p.shape[1]

    # Batch tile: large enough to amortize per-grid-step overhead, but capped so
    # there are >=2 grid steps whenever possible (v7x has 2 TensorCores and the
    # batch axis is marked "parallel").
    tb = max(8, min(block_b, _round_up(pl.cdiv(B, 2), 8)))
    grid = (pl.cdiv(B, tb),)

    const = lambda i: (0, 0)  # weights/biases: same block every step (VMEM-resident)

    out = pl.pallas_call(
        functools.partial(generative_kernel, action_dim=A),
        out_shape=jax.ShapeDtypeStruct((B, A), jnp.float32),
        grid=grid,
        in_specs=[
            pl.BlockSpec((tb, S), lambda i: (i, 0)),        # x tile (ragged tail ok)
            pl.BlockSpec((S, HIDDEN), const),               # W1
            pl.BlockSpec((1, HIDDEN), const),               # b1
            pl.BlockSpec((HIDDEN, HIDDEN), const),          # W2
            pl.BlockSpec((1, HIDDEN), const),               # b2
            pl.BlockSpec((HIDDEN, HIDDEN), const),          # W3
            pl.BlockSpec((1, HIDDEN), const),               # b3
            pl.BlockSpec((HIDDEN, A_pad), const),           # W4 (lane-padded)
            pl.BlockSpec((1, A_pad), const),                # b4 (padded, mask baked in)
        ],
        out_specs=pl.BlockSpec((tb, A), lambda i: (i, 0)),  # narrow output, no pad
        compiler_params=pltpu.CompilerParams(
            dimension_semantics=("parallel",)),
    )(x, w1, b1, w2, b2, w3, b3, w4_p, b4_p)

    return out


def init_params(key, state_dim, action_dim, hidden=HIDDEN):
    """Deterministic synthetic init (uniform, roughly matching torch Linear scale)."""
    dims = [(state_dim, hidden), (hidden, hidden), (hidden, hidden),
            (hidden, action_dim)]
    params = []
    for (din, dout) in dims:
        key, kw, kb = jax.random.split(key, 3)
        bound = 1.0 / (din ** 0.5)
        W = jax.random.uniform(kw, (din, dout), jnp.float32, -bound, bound)
        b = jax.random.uniform(kb, (1, dout), jnp.float32, -bound, bound)
        params.append((W, b))
    return params


def reference_forward(x, params, matmul_dtype=jnp.float32):
    """Pure-JAX reference; matmul_dtype=bfloat16 mirrors the kernel's MXU path."""
    h = x
    n = len(params)
    for i, (W, b) in enumerate(params):
        h = jnp.dot(h.astype(matmul_dtype), W.astype(matmul_dtype),
                    preferred_element_type=jnp.float32) + b.astype(jnp.float32)
        if i < n - 1:
            h = jnp.maximum(h, 0.0)
    return jax.nn.softmax(h, axis=1)


if __name__ == "__main__":
    key = jax.random.PRNGKey(0)
    kx, kp = jax.random.split(key)

    # Multi-tile: B=300 with tb=152 -> 2 grid steps, last block ragged (4 rows).
    B, STATE, ACTION = 300, 32, 8
    x = jax.random.normal(kx, (B, STATE), jnp.float32)
    params = init_params(kp, STATE, ACTION)

    # One-time parameter prep (cached in real use; not part of the hot path).
    prepared, A = prepare_params(params)
    prepared = jax.tree_util.tree_map(jax.block_until_ready, prepared)

    out = jax.block_until_ready(generative_forward(x, prepared, A))
    assert out.shape == (B, ACTION)

    # Exact normalization now (plain divide), so rows sum to 1 within f32 eps.
    assert jnp.allclose(jnp.sum(out, axis=1), 1.0, atol=1e-5)

    # Tight check vs a bf16-matmul reference, loose check vs the f32 reference.
    ref_bf16 = reference_forward(x, params, matmul_dtype=jnp.bfloat16)
    ref_f32 = reference_forward(x, params, matmul_dtype=jnp.float32)
    assert jnp.allclose(out, ref_bf16, atol=5e-3)
    assert jnp.allclose(out, ref_f32, atol=3e-2)

    print("KERNEL_OK")
</pallas_src>

<mosaic_0001>
module attributes {stable_mosaic.version = 11 : i64} {
  func.func @generative_kernel(%arg0: i32, %arg1: memref<152x32xf32, #tpu.memory_space<vmem>>, %arg2: memref<32x128xbf16, #tpu.memory_space<vmem>>, %arg3: memref<1x128xf32, #tpu.memory_space<vmem>>, %arg4: memref<128x128xbf16, #tpu.memory_space<vmem>>, %arg5: memref<1x128xf32, #tpu.memory_space<vmem>>, %arg6: memref<128x128xbf16, #tpu.memory_space<vmem>>, %arg7: memref<1x128xf32, #tpu.memory_space<vmem>>, %arg8: memref<128x128xbf16, #tpu.memory_space<vmem>>, %arg9: memref<1x128xf32, #tpu.memory_space<vmem>>, %arg10: memref<152x8xf32, #tpu.memory_space<vmem>>) attributes {dimension_semantics = [#tpu.dimension_semantics<parallel>], iteration_bounds = array<i64: 2>, scalar_prefetch = 0 : i64, scratch_operands = 0 : i64, tpu.core_type = #tpu.core_type<tc>, window_params = [{transform_indices = @transform_0, window_bounds = array<i64: 152, 32>}, {pipeline_mode = #tpu.pipeline_mode<synchronous>, transform_indices = @transform_1, window_bounds = array<i64: 32, 128>}, {pipeline_mode = #tpu.pipeline_mode<synchronous>, transform_indices = @transform_2, window_bounds = array<i64: 1, 128>}, {pipeline_mode = #tpu.pipeline_mode<synchronous>, transform_indices = @transform_3, window_bounds = array<i64: 128, 128>}, {pipeline_mode = #tpu.pipeline_mode<synchronous>, transform_indices = @transform_4, window_bounds = array<i64: 1, 128>}, {pipeline_mode = #tpu.pipeline_mode<synchronous>, transform_indices = @transform_5, window_bounds = array<i64: 128, 128>}, {pipeline_mode = #tpu.pipeline_mode<synchronous>, transform_indices = @transform_6, window_bounds = array<i64: 1, 128>}, {pipeline_mode = #tpu.pipeline_mode<synchronous>, transform_indices = @transform_7, window_bounds = array<i64: 128, 128>}, {pipeline_mode = #tpu.pipeline_mode<synchronous>, transform_indices = @transform_8, window_bounds = array<i64: 1, 128>}, {transform_indices = @transform_9, window_bounds = array<i64: 152, 8>}]} {
    %c0 = arith.constant 0 : index
    %c0_0 = arith.constant 0 : index
    %0 = vector.load %arg1[%c0, %c0_0] : memref<152x32xf32, #tpu.memory_space<vmem>>, vector<152x32xf32>
    %1 = arith.truncf %0 : vector<152x32xf32> to vector<152x32xbf16>
    %c0_1 = arith.constant 0 : index
    %c0_2 = arith.constant 0 : index
    %2 = vector.load %arg2[%c0_1, %c0_2] : memref<32x128xbf16, #tpu.memory_space<vmem>>, vector<32x128xbf16>
    %cst = arith.constant dense<0.000000e+00> : vector<152x128xf32>
    %3 = tpu.matmul %1, %2, %cst {dimension_numbers = #tpu.dot_dimension_numbers<[1], [0], [0], [1], [0, 0, 1, 1], [], []>} : vector<152x32xbf16>, vector<32x128xbf16>, vector<152x128xf32> -> vector<152x128xf32>
    %c0_3 = arith.constant 0 : index
    %c0_4 = arith.constant 0 : index
    %4 = vector.load %arg3[%c0_3, %c0_4] : memref<1x128xf32, #tpu.memory_space<vmem>>, vector<1x128xf32>
    %5 = vector.broadcast %4 : vector<1x128xf32> to vector<152x128xf32>
    %6 = arith.addf %3, %5 : vector<152x128xf32>
    %cst_5 = arith.constant 0.000000e+00 : f32
    %7 = vector.broadcast %cst_5 : f32 to vector<152x128xf32>
    %8 = arith.maximumf %6, %7 : vector<152x128xf32>
    %9 = arith.truncf %8 : vector<152x128xf32> to vector<152x128xbf16>
    %c0_6 = arith.constant 0 : index
    %c0_7 = arith.constant 0 : index
    %10 = vector.load %arg4[%c0_6, %c0_7] : memref<128x128xbf16, #tpu.memory_space<vmem>>, vector<128x128xbf16>
    %cst_8 = arith.constant dense<0.000000e+00> : vector<152x128xf32>
    %11 = tpu.matmul %9, %10, %cst_8 {dimension_numbers = #tpu.dot_dimension_numbers<[1], [0], [0], [1], [0, 0, 1, 1], [], []>} : vector<152x128xbf16>, vector<128x128xbf16>, vector<152x128xf32> -> vector<152x128xf32>
    %c0_9 = arith.constant 0 : index
    %c0_10 = arith.constant 0 : index
    %12 = vector.load %arg5[%c0_9, %c0_10] : memref<1x128xf32, #tpu.memory_space<vmem>>, vector<1x128xf32>
    %13 = vector.broadcast %12 : vector<1x128xf32> to vector<152x128xf32>
    %14 = arith.addf %11, %13 : vector<152x128xf32>
    %cst_11 = arith.constant 0.000000e+00 : f32
    %15 = vector.broadcast %cst_11 : f32 to vector<152x128xf32>
    %16 = arith.maximumf %14, %15 : vector<152x128xf32>
    %17 = arith.truncf %16 : vector<152x128xf32> to vector<152x128xbf16>
    %c0_12 = arith.constant 0 : index
    %c0_13 = arith.constant 0 : index
    %18 = vector.load %arg6[%c0_12, %c0_13] : memref<128x128xbf16, #tpu.memory_space<vmem>>, vector<128x128xbf16>
    %cst_14 = arith.constant dense<0.000000e+00> : vector<152x128xf32>
    %19 = tpu.matmul %17, %18, %cst_14 {dimension_numbers = #tpu.dot_dimension_numbers<[1], [0], [0], [1], [0, 0, 1, 1], [], []>} : vector<152x128xbf16>, vector<128x128xbf16>, vector<152x128xf32> -> vector<152x128xf32>
    %c0_15 = arith.constant 0 : index
    %c0_16 = arith.constant 0 : index
    %20 = vector.load %arg7[%c0_15, %c0_16] : memref<1x128xf32, #tpu.memory_space<vmem>>, vector<1x128xf32>
    %21 = vector.broadcast %20 : vector<1x128xf32> to vector<152x128xf32>
    %22 = arith.addf %19, %21 : vector<152x128xf32>
    %cst_17 = arith.constant 0.000000e+00 : f32
    %23 = vector.broadcast %cst_17 : f32 to vector<152x128xf32>
    %24 = arith.maximumf %22, %23 : vector<152x128xf32>
    %25 = arith.truncf %24 : vector<152x128xf32> to vector<152x128xbf16>
    %c0_18 = arith.constant 0 : index
    %c0_19 = arith.constant 0 : index
    %26 = vector.load %arg8[%c0_18, %c0_19] : memref<128x128xbf16, #tpu.memory_space<vmem>>, vector<128x128xbf16>
    %cst_20 = arith.constant dense<0.000000e+00> : vector<152x128xf32>
    %27 = tpu.matmul %25, %26, %cst_20 {dimension_numbers = #tpu.dot_dimension_numbers<[1], [0], [0], [1], [0, 0, 1, 1], [], []>} : vector<152x128xbf16>, vector<128x128xbf16>, vector<152x128xf32> -> vector<152x128xf32>
    %c0_21 = arith.constant 0 : index
    %c0_22 = arith.constant 0 : index
    %28 = vector.load %arg9[%c0_21, %c0_22] : memref<1x128xf32, #tpu.memory_space<vmem>>, vector<1x128xf32>
    %29 = vector.broadcast %28 : vector<1x128xf32> to vector<152x128xf32>
    %30 = arith.addf %27, %29 : vector<152x128xf32>
    %cst_23 = arith.constant dense<0xFF800000> : vector<152xf32>
    %31 = vector.multi_reduction <maximumf>, %30, %cst_23 [1] : vector<152x128xf32> to vector<152xf32>
    %32 = vector.shape_cast %31 : vector<152xf32> to vector<152x1xf32>
    %33 = vector.broadcast %32 : vector<152x1xf32> to vector<152x128xf32>
    %34 = arith.subf %30, %33 : vector<152x128xf32>
    %35 = math.exp %34 : vector<152x128xf32>
    %cst_24 = arith.constant dense<0.000000e+00> : vector<152xf32>
    %36 = vector.multi_reduction <add>, %35, %cst_24 [1] : vector<152x128xf32> to vector<152xf32>
    %37 = vector.shape_cast %36 : vector<152xf32> to vector<152x1xf32>
    %38 = vector.broadcast %37 : vector<152x1xf32> to vector<152x128xf32>
    %39 = arith.divf %35, %38 : vector<152x128xf32>
    %40 = vector.extract_strided_slice %39 {offsets = [0, 0], sizes = [152, 8], strides = [1, 1]} : vector<152x128xf32> to vector<152x8xf32>
    %c0_25 = arith.constant 0 : index
    %c0_26 = arith.constant 0 : index
    %41 = vector.load %arg10[%c0_25, %c0_26] : memref<152x8xf32, #tpu.memory_space<vmem>>, vector<152x8xf32>
    tpu.vector_store %arg10[%c0_25, %c0_26], %40 {strides = array<i32>} : memref<152x8xf32, #tpu.memory_space<vmem>>, vector<152x8xf32>,
    return
  }
  func.func @transform_0(%arg0: i32) -> (i32, i32) {
    %c0_i32 = arith.constant 0 : i32
    %c0_i32_0 = arith.constant 0 : i32
    return %arg0, %c0_i32 : i32, i32
  }
  func.func @transform_1(%arg0: i32) -> (i32, i32) {
    %c0_i32 = arith.constant 0 : i32
    %c0_i32_0 = arith.constant 0 : i32
    %c0_i32_1 = arith.constant 0 : i32
    return %c0_i32, %c0_i32_0 : i32, i32
  }
  func.func @transform_2(%arg0: i32) -> (i32, i32) {
    %c0_i32 = arith.constant 0 : i32
    %c0_i32_0 = arith.constant 0 : i32
    %c0_i32_1 = arith.constant 0 : i32
    return %c0_i32, %c0_i32_0 : i32, i32
  }
  func.func @transform_3(%arg0: i32) -> (i32, i32) {
    %c0_i32 = arith.constant 0 : i32
    %c0_i32_0 = arith.constant 0 : i32
    %c0_i32_1 = arith.constant 0 : i32
    return %c0_i32, %c0_i32_0 : i32, i32
  }
  func.func @transform_4(%arg0: i32) -> (i32, i32) {
    %c0_i32 = arith.constant 0 : i32
    %c0_i32_0 = arith.constant 0 : i32
    %c0_i32_1 = arith.constant 0 : i32
    return %c0_i32, %c0_i32_0 : i32, i32
  }
  func.func @transform_5(%arg0: i32) -> (i32, i32) {
    %c0_i32 = arith.constant 0 : i32
    %c0_i32_0 = arith.constant 0 : i32
    %c0_i32_1 = arith.constant 0 : i32
    return %c0_i32, %c0_i32_0 : i32, i32
  }
  func.func @transform_6(%arg0: i32) -> (i32, i32) {
    %c0_i32 = arith.constant 0 : i32
    %c0_i32_0 = arith.constant 0 : i32
    %c0_i32_1 = arith.constant 0 : i32
    return %c0_i32, %c0_i32_0 : i32, i32
  }
  func.func @transform_7(%arg0: i32) -> (i32, i32) {
    %c0_i32 = arith.constant 0 : i32
    %c0_i32_0 = arith.constant 0 : i32
    %c0_i32_1 = arith.constant 0 : i32
    return %c0_i32, %c0_i32_0 : i32, i32
  }
  func.func @transform_8(%arg0: i32) -> (i32, i32) {
    %c0_i32 = arith.constant 0 : i32
    %c0_i32_0 = arith.constant 0 : i32
    %c0_i32_1 = arith.constant 0 : i32
    return %c0_i32, %c0_i32_0 : i32, i32
  }
  func.func @transform_9(%arg0: i32) -> (i32, i32) {
    %c0_i32 = arith.constant 0 : i32
    %c0_i32_0 = arith.constant 0 : i32
    return %arg0, %c0_i32 : i32, i32
  }
}

</mosaic_0001>

<llo_original>
// kernel: tpu_custom_call.1
$region0: #{tpu_custom_call.1}
  #allocation0 [shape = 'u32[]', space=smem, size = 0x4, offset = 0x4, fixed_abs, tag = 'smem constant byte address 0x4 - core index']
  #allocation1 [shape = 'u32[72,128]{1,0:T(1,128)}', space=vmem, size = 0x9000, scoped, tag = 'internal scratch']
  %s0 = inlined_call_operand.vmem [shape: f32[300,32], index: 0, kind: input, shape index: {}]
  %s1 = inlined_call_operand.vmem [shape: bf16[32,128], index: 1, kind: input, shape index: {}]
  %s2 = inlined_call_operand.vmem [shape: f32[1,128], index: 2, kind: input, shape index: {}]
  %s3 = inlined_call_operand.vmem [shape: bf16[128,128], index: 3, kind: input, shape index: {}]
  %s4 = inlined_call_operand.vmem [shape: f32[1,128], index: 4, kind: input, shape index: {}]
  %s5 = inlined_call_operand.vmem [shape: bf16[128,128], index: 5, kind: input, shape index: {}]
  %s6 = inlined_call_operand.vmem [shape: f32[1,128], index: 6, kind: input, shape index: {}]
  %s7 = inlined_call_operand.vmem [shape: bf16[128,128], index: 7, kind: input, shape index: {}]
  %s8 = inlined_call_operand.vmem [shape: f32[1,128], index: 8, kind: input, shape index: {}]
  %s9 = inlined_call_operand.vmem [shape: f32[300,8], index: 9, kind: output, shape index: {}]
  %s10 = sld [smem:[#allocation0]]
  $region69: #{tpu_custom_call.1} parent=0
    _
  %s12 = ssub.s32 1, %s10
  %s13 = scalar_select 0, %s12, %s10
  loop: start=0, step=1, limit=4
  $region2: #{tpu_custom_call.1} parent=0 // loop_pre_header
    _
  $region3: #{tpu_custom_call.1} parent=0 // loop_header
    %s15 = sphi 0, %s19
    %p16 = scmp.ge.s32.totalorder %s15, 4
    %s25 = sphi 0, %s27
    %s28 = sphi 0, %s25
    %s29 = sphi 0, %s28
    %s45 = sphi 0, %s29
    %s49 = sphi 0, %s49
    %s51 = sphi 0, %s49
    %s52 = sphi 0, %s51
    %s66 = sphi 0, %s52
    %s70 = sphi 0, %s70
    %s72 = sphi 0, %s70
    %s73 = sphi 0, %s72
    %s87 = sphi 0, %s73
    %s91 = sphi 0, %s91
    %s93 = sphi 0, %s91
    %s94 = sphi 0, %s93
    %s108 = sphi 0, %s94
    %s112 = sphi 0, %s112
    %s114 = sphi 0, %s112
    %s115 = sphi 0, %s114
    %s129 = sphi 0, %s115
    %s133 = sphi 0, %s133
    %s135 = sphi 0, %s133
    %s136 = sphi 0, %s135
    %s150 = sphi 0, %s136
    %s154 = sphi 0, %s154
    %s156 = sphi 0, %s154
    %s157 = sphi 0, %s156
    %s171 = sphi 0, %s157
    %s175 = sphi 0, %s175
    %s177 = sphi 0, %s175
    %s178 = sphi 0, %s177
    %s192 = sphi 0, %s178
    %s196 = sphi 0, %s196
    %s198 = sphi 0, %s196
    %s199 = sphi 0, %s198
    %s213 = sphi 0, %s199
    %s219 = sphi 0, %s221
    %s222 = sphi 0, %s219
    %s223 = sphi 0, %s222
    %s239 = sphi 0, %s223
  $region4: #{tpu_custom_call.1} parent=0 // loop_header_branch
    %18 = sbr.rel (%p16) target = $region8
  $region5: #{tpu_custom_call.1} parent=0 // loop_body
    %s20 = ssub.s32 %s15, 1
    %s21 = ssub.s32 %s15, 2
    %s22 = sadd.s32 %s15, 1
    %s23 = ssub.s32 %s15, %s22
    %p24 = scmp.eq.s32.totalorder %s23, 0
    %s26 = sadd.s32 %s25, 1
    %s27 = scalar_select %p24, %s25, %s26
    %p30 = pneg %p24
    %p31 = scmp.eq.s32.totalorder %s15, 1
    %p32 = por %p30, %p31
    %p33 = scmp.ne.s32.totalorder %s25, %s28
    %p34 = scmp.eq.s32.totalorder %s15, 0
    %p35 = por %p33, %p34
    %p36 = scmp.ne.s32.totalorder %s25, %s28
    %p37 = scmp.eq.s32.totalorder %s20, 1
    %p38 = por %p36, %p37
    %p39 = scmp.ne.s32.totalorder %s28, %s29
    %p40 = scmp.eq.s32.totalorder %s20, 0
    %p41 = por %p39, %p40
    %p42 = scmp.ne.s32.totalorder %s28, %s29
    %p43 = scmp.eq.s32.totalorder %s21, 1
    %p44 = por %p42, %p43
    %p46 = scmp.ne.s32.totalorder %s29, %s45
    %p47 = scmp.eq.s32.totalorder %s21, 0
    %p48 = por %p46, %p47
    %s50 = sadd.s32 %s49, 1
    %p53 = scmp.eq.s32.totalorder %s15, 1
    %p54 = scmp.ne.s32.totalorder %s49, %s51
    %p55 = scmp.eq.s32.totalorder %s15, 0
    %p56 = por %p54, %p55
    %p57 = scmp.ne.s32.totalorder %s49, %s51
    %p58 = scmp.eq.s32.totalorder %s20, 1
    %p59 = por %p57, %p58
    %p60 = scmp.ne.s32.totalorder %s51, %s52
    %p61 = scmp.eq.s32.totalorder %s20, 0
    %p62 = por %p60, %p61
    %p63 = scmp.ne.s32.totalorder %s51, %s52
    %p64 = scmp.eq.s32.totalorder %s21, 1
    %p65 = por %p63, %p64
    %p67 = scmp.ne.s32.totalorder %s52, %s66
    %p68 = scmp.eq.s32.totalorder %s21, 0
    %p69 = por %p67, %p68
    %s71 = sadd.s32 %s70, 1
    %p74 = scmp.eq.s32.totalorder %s15, 1
    %p75 = scmp.ne.s32.totalorder %s70, %s72
    %p76 = scmp.eq.s32.totalorder %s15, 0
    %p77 = por %p75, %p76
    %p78 = scmp.ne.s32.totalorder %s70, %s72
    %p79 = scmp.eq.s32.totalorder %s20, 1
    %p80 = por %p78, %p79
    %p81 = scmp.ne.s32.totalorder %s72, %s73
    %p82 = scmp.eq.s32.totalorder %s20, 0
    %p83 = por %p81, %p82
    %p84 = scmp.ne.s32.totalorder %s72, %s73
    %p85 = scmp.eq.s32.totalorder %s21, 1
    %p86 = por %p84, %p85
    %p88 = scmp.ne.s32.totalorder %s73, %s87
    %p89 = scmp.eq.s32.totalorder %s21, 0
    %p90 = por %p88, %p89
    %s92 = sadd.s32 %s91, 1
    %p95 = scmp.eq.s32.totalorder %s15, 1
    %p96 = scmp.ne.s32.totalorder %s91, %s93
    %p97 = scmp.eq.s32.totalorder %s15, 0
    %p98 = por %p96, %p97
    %p99 = scmp.ne.s32.totalorder %s91, %s93
    %p100 = scmp.eq.s32.totalorder %s20, 1
    %p101 = por %p99, %p100
    %p102 = scmp.ne.s32.totalorder %s93, %s94
    %p103 = scmp.eq.s32.totalorder %s20, 0
    %p104 = por %p102, %p103
    %p105 = scmp.ne.s32.totalorder %s93, %s94
    %p106 = scmp.eq.s32.totalorder %s21, 1
    %p107 = por %p105, %p106
    %p109 = scmp.ne.s32.totalorder %s94, %s108
    %p110 = scmp.eq.s32.totalorder %s21, 0
    %p111 = por %p109, %p110
    %s113 = sadd.s32 %s112, 1
    %p116 = scmp.eq.s32.totalorder %s15, 1
    %p117 = scmp.ne.s32.totalorder %s112, %s114
    %p118 = scmp.eq.s32.totalorder %s15, 0
    %p119 = por %p117, %p118
    %p120 = scmp.ne.s32.totalorder %s112, %s114
    %p121 = scmp.eq.s32.totalorder %s20, 1
    %p122 = por %p120, %p121
    %p123 = scmp.ne.s32.totalorder %s114, %s115
    %p124 = scmp.eq.s32.totalorder %s20, 0
    %p125 = por %p123, %p124
    %p126 = scmp.ne.s32.totalorder %s114, %s115
    %p127 = scmp.eq.s32.totalorder %s21, 1
    %p128 = por %p126, %p127
    %p130 = scmp.ne.s32.totalorder %s115, %s129
    %p131 = scmp.eq.s32.totalorder %s21, 0
    %p132 = por %p130, %p131
    %s134 = sadd.s32 %s133, 1
    %p137 = scmp.eq.s32.totalorder %s15, 1
    %p138 = scmp.ne.s32.totalorder %s133, %s135
    %p139 = scmp.eq.s32.totalorder %s15, 0
    %p140 = por %p138, %p139
    %p141 = scmp.ne.s32.totalorder %s133, %s135
    %p142 = scmp.eq.s32.totalorder %s20, 1
    %p143 = por %p141, %p142
    %p144 = scmp.ne.s32.totalorder %s135, %s136
    %p145 = scmp.eq.s32.totalorder %s20, 0
    %p146 = por %p144, %p145
    %p147 = scmp.ne.s32.totalorder %s135, %s136
    %p148 = scmp.eq.s32.totalorder %s21, 1
    %p149 = por %p147, %p148
    %p151 = scmp.ne.s32.totalorder %s136, %s150
    %p152 = scmp.eq.s32.totalorder %s21, 0
    %p153 = por %p151, %p152
    %s155 = sadd.s32 %s154, 1
    %p158 = scmp.eq.s32.totalorder %s15, 1
    %p159 = scmp.ne.s32.totalorder %s154, %s156
    %p160 = scmp.eq.s32.totalorder %s15, 0
    %p161 = por %p159, %p160
    %p162 = scmp.ne.s32.totalorder %s154, %s156
    %p163 = scmp.eq.s32.totalorder %s20, 1
    %p164 = por %p162, %p163
    %p165 = scmp.ne.s32.totalorder %s156, %s157
    %p166 = scmp.eq.s32.totalorder %s20, 0
    %p167 = por %p165, %p166
    %p168 = scmp.ne.s32.totalorder %s156, %s157
    %p169 = scmp.eq.s32.totalorder %s21, 1
    %p170 = por %p168, %p169
    %p172 = scmp.ne.s32.totalorder %s157, %s171
    %p173 = scmp.eq.s32.totalorder %s21, 0
    %p174 = por %p172, %p173
    %s176 = sadd.s32 %s175, 1
    %p179 = scmp.eq.s32.totalorder %s15, 1
    %p180 = scmp.ne.s32.totalorder %s175, %s177
    %p181 = scmp.eq.s32.totalorder %s15, 0
    %p182 = por %p180, %p181
    %p183 = scmp.ne.s32.totalorder %s175, %s177
    %p184 = scmp.eq.s32.totalorder %s20, 1
    %p185 = por %p183, %p184
    %p186 = scmp.ne.s32.totalorder %s177, %s178
    %p187 = scmp.eq.s32.totalorder %s20, 0
    %p188 = por %p186, %p187
    %p189 = scmp.ne.s32.totalorder %s177, %s178
    %p190 = scmp.eq.s32.totalorder %s21, 1
    %p191 = por %p189, %p190
    %p193 = scmp.ne.s32.totalorder %s178, %s192
    %p194 = scmp.eq.s32.totalorder %s21, 0
    %p195 = por %p193, %p194
    %s197 = sadd.s32 %s196, 1
    %p200 = scmp.eq.s32.totalorder %s15, 1
    %p201 = scmp.ne.s32.totalorder %s196, %s198
    %p202 = scmp.eq.s32.totalorder %s15, 0
    %p203 = por %p201, %p202
    %p204 = scmp.ne.s32.totalorder %s196, %s198
    %p205 = scmp.eq.s32.totalorder %s20, 1
    %p206 = por %p204, %p205
    %p207 = scmp.ne.s32.totalorder %s198, %s199
    %p208 = scmp.eq.s32.totalorder %s20, 0
    %p209 = por %p207, %p208
    %p210 = scmp.ne.s32.totalorder %s198, %s199
    %p211 = scmp.eq.s32.totalorder %s21, 1
    %p212 = por %p210, %p211
    %p214 = scmp.ne.s32.totalorder %s199, %s213
    %p215 = scmp.eq.s32.totalorder %s21, 0
    %p216 = por %p214, %p215
    %s217 = ssub.s32 %s15, %s22
    %p218 = scmp.eq.s32.totalorder %s217, 0
    %s220 = sadd.s32 %s219, 1
    %s221 = scalar_select %p218, %s219, %s220
    %p224 = pneg %p218
    %p225 = scmp.eq.s32.totalorder %s15, 1
    %p226 = por %p224, %p225
    %p227 = scmp.ne.s32.totalorder %s219, %s222
    %p228 = scmp.eq.s32.totalorder %s15, 0
    %p229 = por %p227, %p228
    %p230 = scmp.ne.s32.totalorder %s219, %s222
    %p231 = scmp.eq.s32.totalorder %s20, 1
    %p232 = por %p230, %p231
    %p233 = scmp.ne.s32.totalorder %s222, %s223
    %p234 = scmp.eq.s32.totalorder %s20, 0
    %p235 = por %p233, %p234
    %p236 = scmp.ne.s32.totalorder %s222, %s223
    %p237 = scmp.eq.s32.totalorder %s21, 1
    %p238 = por %p236, %p237
    %p240 = scmp.ne.s32.totalorder %s223, %s239
    %p241 = scmp.eq.s32.totalorder %s21, 0
    %p242 = por %p240, %p241
    %p243 = scmp.le.s32.totalorder 1, %s15
    %p244 = scmp.lt.s32.totalorder %s15, 3
    %p245 = pnand %p243, %p244
    %p246 = pneg %p245
    // Predicated region
    $region9: #{tpu_custom_call.1} parent=5 // pred_check
      _
    $region10: #{tpu_custom_call.1} parent=5 // pred_check_branch
      %248 = sbr.rel (%p245) target = $region12
    $region11: #{tpu_custom_call.1} parent=5 // pred_region
      %s249 = ssub.s32 %s15, 1
      // Predicated region
      $region13: #{tpu_custom_call.1} parent=11 // pred_check
        %p250 = pneg %p62
      $region14: #{tpu_custom_call.1} parent=11 // pred_check_branch
        %252 = sbr.rel (%p250) target = $region16
      $region15: #{tpu_custom_call.1} parent=11 // pred_region
        _
      $region16: #{tpu_custom_call.1} parent=11 // pred_fallthru
        _
      // Predicated region
      $region17: #{tpu_custom_call.1} parent=11 // pred_check
        %p253 = pneg %p83
      $region18: #{tpu_custom_call.1} parent=11 // pred_check_branch
        %255 = sbr.rel (%p253) target = $region20
      $region19: #{tpu_custom_call.1} parent=11 // pred_region
        _
      $region20: #{tpu_custom_call.1} parent=11 // pred_fallthru
        _
      // Predicated region
      $region21: #{tpu_custom_call.1} parent=11 // pred_check
        %p256 = pneg %p104
      $region22: #{tpu_custom_call.1} parent=11 // pred_check_branch
        %258 = sbr.rel (%p256) target = $region24
      $region23: #{tpu_custom_call.1} parent=11 // pred_region
        _
      $region24: #{tpu_custom_call.1} parent=11 // pred_fallthru
        _
      // Predicated region
      $region25: #{tpu_custom_call.1} parent=11 // pred_check
        %p259 = pneg %p125
      $region26: #{tpu_custom_call.1} parent=11 // pred_check_branch
        %261 = sbr.rel (%p259) target = $region28
      $region27: #{tpu_custom_call.1} parent=11 // pred_region
        _
      $region28: #{tpu_custom_call.1} parent=11 // pred_fallthru
        _
      // Predicated region
      $region29: #{tpu_custom_call.1} parent=11 // pred_check
        %p262 = pneg %p146
      $region30: #{tpu_custom_call.1} parent=11 // pred_check_branch
        %264 = sbr.rel (%p262) target = $region32
      $region31: #{tpu_custom_call.1} parent=11 // pred_region
        _
      $region32: #{tpu_custom_call.1} parent=11 // pred_fallthru
        _
      // Predicated region
      $region33: #{tpu_custom_call.1} parent=11 // pred_check
        %p265 = pneg %p167
      $region34: #{tpu_custom_call.1} parent=11 // pred_check_branch
        %267 = sbr.rel (%p265) target = $region36
      $region35: #{tpu_custom_call.1} parent=11 // pred_region
        _
      $region36: #{tpu_custom_call.1} parent=11 // pred_fallthru
        _
      // Predicated region
      $region37: #{tpu_custom_call.1} parent=11 // pred_check
        %p268 = pneg %p188
      $region38: #{tpu_custom_call.1} parent=11 // pred_check_branch
        %270 = sbr.rel (%p268) target = $region40
      $region39: #{tpu_custom_call.1} parent=11 // pred_region
        _
      $region40: #{tpu_custom_call.1} parent=11 // pred_fallthru
        _
      // Predicated region
      $region41: #{tpu_custom_call.1} parent=11 // pred_check
        %p271 = pneg %p209
      $region42: #{tpu_custom_call.1} parent=11 // pred_check_branch
        %273 = sbr.rel (%p271) target = $region44
      $region43: #{tpu_custom_call.1} parent=11 // pred_region
        _
      $region44: #{tpu_custom_call.1} parent=11 // pred_fallthru
        _
    $region12: #{tpu_custom_call.1} parent=5 // pred_fallthru
      _
    %p274 = scmp.lt.s32.totalorder %s15, 2
    // Predicated region
    $region45: #{tpu_custom_call.1} parent=5 // pred_check
      %p275 = pneg %p274
    $region46: #{tpu_custom_call.1} parent=5 // pred_check_branch
      %277 = sbr.rel (%p275) target = $region48
    $region47: #{tpu_custom_call.1} parent=5 // pred_region
      // Predicated region
      $region49: #{tpu_custom_call.1} parent=47 // pred_check
        %p278 = pneg %p35
      $region50: #{tpu_custom_call.1} parent=47 // pred_check_branch
        %280 = sbr.rel (%p278) target = $region52
      $region51: #{tpu_custom_call.1} parent=47 // pred_region
        %s281 = smul.u32 19, %s15
        %p282 = scmp.lt.s32.totalorder %s281, 37
        %s283 = scalar_select %p282, %s281, 37
        %s284 = smul.addr %s283, 8
        %s285 = scalar_lea.vmem %s0, %s284
        %s286 = smul.u32 19, %s15
      $region52: #{tpu_custom_call.1} parent=47 // pred_fallthru
        _
    $region48: #{tpu_custom_call.1} parent=5 // pred_fallthru
      _
    %p287 = scmp.le.s32.totalorder 1, %s15
    %p288 = scmp.lt.s32.totalorder %s15, 3
    %p289 = pnand %p287, %p288
    %p290 = pneg %p289
    // Predicated region
    $region53: #{tpu_custom_call.1} parent=5 // pred_check
      _
    $region54: #{tpu_custom_call.1} parent=5 // pred_check_branch
      %292 = sbr.rel (%p289) target = $region56
    $region55: #{tpu_custom_call.1} parent=5 // pred_region
      %s293 = ssub.s32 %s15, 1
      %s294 = smul.u32 19, %s20
      %p295 = scmp.lt.s32.totalorder %s294, 37
      %s296 = scalar_select %p295, %s294, 37
      %s297 = smul.addr %s296, 8
      %s298 = scalar_lea.vmem %s0, %s297
      %p299 = pneg %p41
      %p300 = pneg %p38
      %p301 = pneg %p62
      %p302 = pneg %p59
      %p303 = pneg %p83
      %p304 = pneg %p80
      %p305 = pneg %p104
      %p306 = pneg %p101
      %p307 = pneg %p125
      %p308 = pneg %p122
      %p309 = pneg %p146
      %p310 = pneg %p143
      %p311 = pneg %p167
      %p312 = pneg %p164
      %p313 = pneg %p188
      %p314 = pneg %p185
      %p315 = pneg %p209
      %p316 = pneg %p206
      %p317 = pneg %p235
      %p318 = pneg %p232
      %s319 = smul.u32 19, %s20
      %p320 = scmp.lt.s32.totalorder %s319, 37
      %s321 = scalar_select %p320, %s319, 37
      %s322 = smul.addr %s321, 8
      %s323 = scalar_lea.vmem %s9, %s322
      %s324 = smul.u32 19, %s20
      %p325 = scmp.lt.s32.totalorder %s324, 37
      %s326 = scalar_select %p325, %s324, 37
      %s327 = smul.addr %s326, 8
      %s328 = scalar_lea.vmem %s0, %s327
      %s329 = smul.u32 19, %s20
      %s330 = smul.u32 19, %s20
      %p331 = scmp.lt.s32.totalorder %s330, 37
      %s332 = scalar_select %p331, %s330, 37
      %s333 = smul.addr %s332, 8
      %s334 = scalar_lea.vmem %s9, %s333
      %s335 = smul.u32 19, %s20
      %v337 = vld [vmem:[%s328] sm:$0xff]
      %v338 = vld [vmem:[%s328 + $0x8] sm:$0xff]
      %v339 = vld [vmem:[%s328 + $0x10] sm:$0xff]
      %v340 = vld [vmem:[%s328 + $0x18] sm:$0xff]
      %v341 = vld [vmem:[%s328 + $0x20] sm:$0xff]
      %v342 = vld [vmem:[%s328 + $0x28] sm:$0xff]
      %v343 = vld [vmem:[%s328 + $0x30] sm:$0xff]
      %v344 = vld [vmem:[%s328 + $0x38] sm:$0xff]
      %v345 = vld [vmem:[%s328 + $0x40] sm:$0xff]
      %v346 = vld [vmem:[%s328 + $0x48] sm:$0xff]
      %v347 = vld [vmem:[%s328 + $0x50] sm:$0xff]
      %v348 = vld [vmem:[%s328 + $0x58] sm:$0xff]
      %v349 = vld [vmem:[%s328 + $0x60] sm:$0xff]
      %v350 = vld [vmem:[%s328 + $0x68] sm:$0xff]
      %v351 = vld [vmem:[%s328 + $0x70] sm:$0xff]
      %v352 = vld [vmem:[%s328 + $0x78] sm:$0xff]
      %v353 = vld [vmem:[%s328 + $0x80] sm:$0xff]
      %v354 = vld [vmem:[%s328 + $0x88] sm:$0xff]
      %v355 = vld [vmem:[%s328 + $0x90] sm:$0xff]
      %v356 = vpack.c.bf16 %v338, %v337
      %v357 = vpack.c.bf16 %v340, %v339
      %v358 = vpack.c.bf16 %v342, %v341
      %v359 = vpack.c.bf16 %v344, %v343
      %v360 = vpack.c.bf16 %v346, %v345
      %v361 = vpack.c.bf16 %v348, %v347
      %v362 = vpack.c.bf16 %v350, %v349
      %v363 = vpack.c.bf16 %v352, %v351
      %v364 = vpack.c.bf16 %v354, %v353
      %v365 = vpack.c.bf16 %v355, %v355
      %v366 = vld [vmem:[%s1] sm:$0xf]
      %v367 = vld [vmem:[%s1 + $0x4] sm:$0xf]
      %v368 = vld [vmem:[%s1 + $0x8] sm:$0xf]
      %v369 = vld [vmem:[%s1 + $0xc] sm:$0xf]
      %v370 = vld [vmem:[%s2] sm:$0x1]
      %v372 = vperm.slane %v370, 0
      %v378 = vunpack.c.l.b16 %v366
      %v379 = vunpack.c.l.b16 %v367
      %v380 = vunpack.c.l.b16 %v368
      %v381 = vunpack.c.l.b16 %v369
      %v382 = vpack.c.b16 %v379, %v378
      %v383 = vpack.c.b16 %v381, %v380
      %vm386 = vcmask 261120
      %v388 = vsel %vm386, %v356, 0
      %v391 = vsel %vm386, %v357, 0
      %v394 = vsel %vm386, %v358, 0
      %v397 = vsel %vm386, %v359, 0
      %v400 = vsel %vm386, %v360, 0
      %v403 = vsel %vm386, %v361, 0
      %v406 = vsel %vm386, %v362, 0
      %v409 = vsel %vm386, %v363, 0
      %v412 = vsel %vm386, %v364, 0
      %v415 = vsel %vm386, %v365, 0
      %417 = vmatpush.bf16.msra.mxu0 0
      %418 = vmatpush.bf16.msra.mxu0 0
      %419 = vmatpush.bf16.msra.mxu0 0
      %420 = vmatpush.bf16.msra.mxu0 0
      %421 = vmatpush.bf16.msra.mxu0 0
      %422 = vmatpush.bf16.msra.mxu0 0
      %423 = vmatpush.bf16.msra.mxu0 %v383
      %424 = vmatpush.bf16.msra.mxu0 %v382
      %425 = vmatmul.bf16.gmra.mxu0 %v388
      %v426 = vpop.f32.mrf.mxu0
      %v427 = vadd.f32 %v372, %v426
      %v428 = vpop.f32.mrf.mxu0
      %v429 = vadd.f32 %v372, %v428
      %430 = vmatmul.bf16.gmra.mxu0 %v391
      %v431 = vpop.f32.mrf.mxu0
      %v432 = vadd.f32 %v372, %v431
      %v433 = vpop.f32.mrf.mxu0
      %v434 = vadd.f32 %v372, %v433
      %435 = vmatmul.bf16.gmra.mxu0 %v394
      %v436 = vpop.f32.mrf.mxu0
      %v437 = vadd.f32 %v372, %v436
      %v438 = vpop.f32.mrf.mxu0
      %v439 = vadd.f32 %v372, %v438
      %440 = vmatmul.bf16.gmra.mxu0 %v397
      %v441 = vpop.f32.mrf.mxu0
      %v442 = vadd.f32 %v372, %v441
      %v443 = vpop.f32.mrf.mxu0
      %v444 = vadd.f32 %v372, %v443
      %445 = vmatmul.bf16.gmra.mxu0 %v400
      %v446 = vpop.f32.mrf.mxu0
      %v447 = vadd.f32 %v372, %v446
      %v448 = vpop.f32.mrf.mxu0
      %v449 = vadd.f32 %v372, %v448
      %450 = vmatmul.bf16.gmra.mxu0 %v403
      %v451 = vpop.f32.mrf.mxu0
      %v452 = vadd.f32 %v372, %v451
      %v453 = vpop.f32.mrf.mxu0
      %v454 = vadd.f32 %v372, %v453
      %455 = vmatmul.bf16.gmra.mxu0 %v406
      %v456 = vpop.f32.mrf.mxu0
      %v457 = vadd.f32 %v372, %v456
      %v458 = vpop.f32.mrf.mxu0
      %v459 = vadd.f32 %v372, %v458
      %460 = vmatmul.bf16.gmra.mxu0 %v409
      %v461 = vpop.f32.mrf.mxu0
      %v462 = vadd.f32 %v372, %v461
      %v463 = vpop.f32.mrf.mxu0
      %v464 = vadd.f32 %v372, %v463
      %465 = vmatmul.bf16.gmra.mxu0 %v412
      %v466 = vpop.f32.mrf.mxu0
      %v467 = vadd.f32 %v372, %v466
      %v468 = vpop.f32.mrf.mxu0
      %v469 = vadd.f32 %v372, %v468
      %470 = vmatmul.bf16.gmra.mxu0 %v415
      %v471 = vpop.f32.mrf.mxu0
      %v472 = vadd.f32 %v372, %v471
      %v473 = vpop.f32.mrf.mxu0
      %474 = vdwg.mxu0
      %v475 = vmax.f32 %v427, 0.0
      %v476 = vmax.f32 %v429, 0.0
      %v477 = vmax.f32 %v432, 0.0
      %v478 = vmax.f32 %v434, 0.0
      %v479 = vmax.f32 %v437, 0.0
      %v480 = vmax.f32 %v439, 0.0
      %v481 = vmax.f32 %v442, 0.0
      %v482 = vmax.f32 %v444, 0.0
      %v483 = vmax.f32 %v447, 0.0
      %v484 = vmax.f32 %v449, 0.0
      %v485 = vmax.f32 %v452, 0.0
      %v486 = vmax.f32 %v454, 0.0
      %v487 = vmax.f32 %v457, 0.0
      %v488 = vmax.f32 %v459, 0.0
      %v489 = vmax.f32 %v462, 0.0
      %v490 = vmax.f32 %v464, 0.0
      %v491 = vmax.f32 %v467, 0.0
      %v492 = vmax.f32 %v469, 0.0
      %v493 = vmax.f32 %v472, 0.0
      %v494 = vpack.c.bf16 %v476, %v475
      %v495 = vpack.c.bf16 %v478, %v477
      %v496 = vpack.c.bf16 %v480, %v479
      %v497 = vpack.c.bf16 %v482, %v481
      %v498 = vpack.c.bf16 %v484, %v483
      %v499 = vpack.c.bf16 %v486, %v485
      %v500 = vpack.c.bf16 %v488, %v487
      %v501 = vpack.c.bf16 %v490, %v489
      %v502 = vpack.c.bf16 %v492, %v491
      %v503 = vpack.c.bf16 %v493, %v493
      %v504 = vld [vmem:[%s3] sm:$0xf]
      %v505 = vld [vmem:[%s3 + $0x4] sm:$0xf]
      %v506 = vld [vmem:[%s3 + $0x8] sm:$0xf]
      %v507 = vld [vmem:[%s3 + $0xc] sm:$0xf]
      %v508 = vld [vmem:[%s3 + $0x10] sm:$0xf]
      %v509 = vld [vmem:[%s3 + $0x14] sm:$0xf]
      %v510 = vld [vmem:[%s3 + $0x18] sm:$0xf]
      %v511 = vld [vmem:[%s3 + $0x1c] sm:$0xf]
      %v512 = vld [vmem:[%s3 + $0x20] sm:$0xf]
      %v513 = vld [vmem:[%s3 + $0x24] sm:$0xf]
      %v514 = vld [vmem:[%s3 + $0x28] sm:$0xf]
      %v515 = vld [vmem:[%s3 + $0x2c] sm:$0xf]
      %v516 = vld [vmem:[%s3 + $0x30] sm:$0xf]
      %v517 = vld [vmem:[%s3 + $0x34] sm:$0xf]
      %v518 = vld [vmem:[%s3 + $0x38] sm:$0xf]
      %v519 = vld [vmem:[%s3 + $0x3c] sm:$0xf]
      %v520 = vld [vmem:[%s4] sm:$0x1]
      %v522 = vperm.slane %v520, 0
      %v540 = vunpack.c.l.b16 %v504
      %v541 = vunpack.c.l.b16 %v505
      %v542 = vunpack.c.l.b16 %v506
      %v543 = vunpack.c.l.b16 %v507
      %v544 = vunpack.c.l.b16 %v508
      %v545 = vunpack.c.l.b16 %v509
      %v546 = vunpack.c.l.b16 %v510
      %v547 = vunpack.c.l.b16 %v511
      %v548 = vunpack.c.l.b16 %v512
      %v549 = vunpack.c.l.b16 %v513
      %v550 = vunpack.c.l.b16 %v514
      %v551 = vunpack.c.l.b16 %v515
      %v552 = vunpack.c.l.b16 %v516
      %v553 = vunpack.c.l.b16 %v517
      %v554 = vunpack.c.l.b16 %v518
      %v555 = vunpack.c.l.b16 %v519
      %v556 = vpack.c.b16 %v541, %v540
      %v557 = vpack.c.b16 %v543, %v542
      %v558 = vpack.c.b16 %v545, %v544
      %v559 = vpack.c.b16 %v547, %v546
      %v560 = vpack.c.b16 %v549, %v548
      %v561 = vpack.c.b16 %v551, %v550
      %v562 = vpack.c.b16 %v553, %v552
      %v563 = vpack.c.b16 %v555, %v554
      %572 = vmatpush.bf16.msra.mxu0 %v563
      %573 = vmatpush.bf16.msra.mxu0 %v562
      %574 = vmatpush.bf16.msra.mxu0 %v561
      %575 = vmatpush.bf16.msra.mxu0 %v560
      %576 = vmatpush.bf16.msra.mxu0 %v559
      %577 = vmatpush.bf16.msra.mxu0 %v558
      %578 = vmatpush.bf16.msra.mxu0 %v557
      %579 = vmatpush.bf16.msra.mxu0 %v556
      %580 = vmatmul.bf16.gmra.mxu0 %v494
      %v581 = vpop.f32.mrf.mxu0
      %v582 = vadd.f32 %v522, %v581
      %v583 = vpop.f32.mrf.mxu0
      %v584 = vadd.f32 %v522, %v583
      %585 = vmatmul.bf16.gmra.mxu0 %v495
      %v586 = vpop.f32.mrf.mxu0
      %v587 = vadd.f32 %v522, %v586
      %v588 = vpop.f32.mrf.mxu0
      %v589 = vadd.f32 %v522, %v588
      %590 = vmatmul.bf16.gmra.mxu0 %v496
      %v591 = vpop.f32.mrf.mxu0
      %v592 = vadd.f32 %v522, %v591
      %v593 = vpop.f32.mrf.mxu0
      %v594 = vadd.f32 %v522, %v593
      %595 = vmatmul.bf16.gmra.mxu0 %v497
      %v596 = vpop.f32.mrf.mxu0
      %v597 = vadd.f32 %v522, %v596
      %v598 = vpop.f32.mrf.mxu0
      %v599 = vadd.f32 %v522, %v598
      %600 = vmatmul.bf16.gmra.mxu0 %v498
      %v601 = vpop.f32.mrf.mxu0
      %v602 = vadd.f32 %v522, %v601
      %v603 = vpop.f32.mrf.mxu0
      %v604 = vadd.f32 %v522, %v603
      %605 = vmatmul.bf16.gmra.mxu0 %v499
      %v606 = vpop.f32.mrf.mxu0
      %v607 = vadd.f32 %v522, %v606
      %v608 = vpop.f32.mrf.mxu0
      %v609 = vadd.f32 %v522, %v608
      %610 = vmatmul.bf16.gmra.mxu0 %v500
      %v611 = vpop.f32.mrf.mxu0
      %v612 = vadd.f32 %v522, %v611
      %v613 = vpop.f32.mrf.mxu0
      %v614 = vadd.f32 %v522, %v613
      %615 = vmatmul.bf16.gmra.mxu0 %v501
      %v616 = vpop.f32.mrf.mxu0
      %v617 = vadd.f32 %v522, %v616
      %v618 = vpop.f32.mrf.mxu0
      %v619 = vadd.f32 %v522, %v618
      %620 = vmatmul.bf16.gmra.mxu0 %v502
      %v621 = vpop.f32.mrf.mxu0
      %v622 = vadd.f32 %v522, %v621
      %v623 = vpop.f32.mrf.mxu0
      %v624 = vadd.f32 %v522, %v623
      %625 = vmatmul.bf16.gmra.mxu0 %v503
      %v626 = vpop.f32.mrf.mxu0
      %v627 = vadd.f32 %v522, %v626
      %v628 = vpop.f32.mrf.mxu0
      %629 = vdwg.mxu0
      %v630 = vmax.f32 %v582, 0.0
      %v631 = vmax.f32 %v584, 0.0
      %v632 = vmax.f32 %v587, 0.0
      %v633 = vmax.f32 %v589, 0.0
      %v634 = vmax.f32 %v592, 0.0
      %v635 = vmax.f32 %v594, 0.0
      %v636 = vmax.f32 %v597, 0.0
      %v637 = vmax.f32 %v599, 0.0
      %v638 = vmax.f32 %v602, 0.0
      %v639 = vmax.f32 %v604, 0.0
      %v640 = vmax.f32 %v607, 0.0
      %v641 = vmax.f32 %v609, 0.0
      %v642 = vmax.f32 %v612, 0.0
      %v643 = vmax.f32 %v614, 0.0
      %v644 = vmax.f32 %v617, 0.0
      %v645 = vmax.f32 %v619, 0.0
      %v646 = vmax.f32 %v622, 0.0
      %v647 = vmax.f32 %v624, 0.0
      %v648 = vmax.f32 %v627, 0.0
      %v649 = vpack.c.bf16 %v631, %v630
      %v650 = vpack.c.bf16 %v633, %v632
      %v651 = vpack.c.bf16 %v635, %v634
      %v652 = vpack.c.bf16 %v637, %v636
      %v653 = vpack.c.bf16 %v639, %v638
      %v654 = vpack.c.bf16 %v641, %v640
      %v655 = vpack.c.bf16 %v643, %v642
      %v656 = vpack.c.bf16 %v645, %v644
      %v657 = vpack.c.bf16 %v647, %v646
      %v658 = vpack.c.bf16 %v648, %v648
      %v659 = vld [vmem:[%s5] sm:$0xf]
      %v660 = vld [vmem:[%s5 + $0x4] sm:$0xf]
      %v661 = vld [vmem:[%s5 + $0x8] sm:$0xf]
      %v662 = vld [vmem:[%s5 + $0xc] sm:$0xf]
      %v663 = vld [vmem:[%s5 + $0x10] sm:$0xf]
      %v664 = vld [vmem:[%s5 + $0x14] sm:$0xf]
      %v665 = vld [vmem:[%s5 + $0x18] sm:$0xf]
      %v666 = vld [vmem:[%s5 + $0x1c] sm:$0xf]
      %v667 = vld [vmem:[%s5 + $0x20] sm:$0xf]
      %v668 = vld [vmem:[%s5 + $0x24] sm:$0xf]
      %v669 = vld [vmem:[%s5 + $0x28] sm:$0xf]
      %v670 = vld [vmem:[%s5 + $0x2c] sm:$0xf]
      %v671 = vld [vmem:[%s5 + $0x30] sm:$0xf]
      %v672 = vld [vmem:[%s5 + $0x34] sm:$0xf]
      %v673 = vld [vmem:[%s5 + $0x38] sm:$0xf]
      %v674 = vld [vmem:[%s5 + $0x3c] sm:$0xf]
      %v675 = vld [vmem:[%s6] sm:$0x1]
      %v677 = vperm.slane %v675, 0
      %v695 = vunpack.c.l.b16 %v659
      %v696 = vunpack.c.l.b16 %v660
      %v697 = vunpack.c.l.b16 %v661
      %v698 = vunpack.c.l.b16 %v662
      %v699 = vunpack.c.l.b16 %v663
      %v700 = vunpack.c.l.b16 %v664
      %v701 = vunpack.c.l.b16 %v665
      %v702 = vunpack.c.l.b16 %v666
      %v703 = vunpack.c.l.b16 %v667
      %v704 = vunpack.c.l.b16 %v668
      %v705 = vunpack.c.l.b16 %v669
      %v706 = vunpack.c.l.b16 %v670
      %v707 = vunpack.c.l.b16 %v671
      %v708 = vunpack.c.l.b16 %v672
      %v709 = vunpack.c.l.b16 %v673
      %v710 = vunpack.c.l.b16 %v674
      %v711 = vpack.c.b16 %v696, %v695
      %v712 = vpack.c.b16 %v698, %v697
      %v713 = vpack.c.b16 %v700, %v699
      %v714 = vpack.c.b16 %v702, %v701
      %v715 = vpack.c.b16 %v704, %v703
      %v716 = vpack.c.b16 %v706, %v705
      %v717 = vpack.c.b16 %v708, %v707
      %v718 = vpack.c.b16 %v710, %v709
      %727 = vmatpush.bf16.msra.mxu0 %v718
      %728 = vmatpush.bf16.msra.mxu0 %v717
      %729 = vmatpush.bf16.msra.mxu0 %v716
      %730 = vmatpush.bf16.msra.mxu0 %v715
      %731 = vmatpush.bf16.msra.mxu0 %v714
      %732 = vmatpush.bf16.msra.mxu0 %v713
      %733 = vmatpush.bf16.msra.mxu0 %v712
      %734 = vmatpush.bf16.msra.mxu0 %v711
      %735 = vmatmul.bf16.gmra.mxu0 %v649
      %v736 = vpop.f32.mrf.mxu0
      %v737 = vadd.f32 %v677, %v736
      %v738 = vpop.f32.mrf.mxu0
      %v739 = vadd.f32 %v677, %v738
      %740 = vmatmul.bf16.gmra.mxu0 %v650
      %v741 = vpop.f32.mrf.mxu0
      %v742 = vadd.f32 %v677, %v741
      %v743 = vpop.f32.mrf.mxu0
      %v744 = vadd.f32 %v677, %v743
      %745 = vmatmul.bf16.gmra.mxu0 %v651
      %v746 = vpop.f32.mrf.mxu0
      %v747 = vadd.f32 %v677, %v746
      %v748 = vpop.f32.mrf.mxu0
      %v749 = vadd.f32 %v677, %v748
      %750 = vmatmul.bf16.gmra.mxu0 %v652
      %v751 = vpop.f32.mrf.mxu0
      %v752 = vadd.f32 %v677, %v751
      %v753 = vpop.f32.mrf.mxu0
      %v754 = vadd.f32 %v677, %v753
      %755 = vmatmul.bf16.gmra.mxu0 %v653
      %v756 = vpop.f32.mrf.mxu0
      %v757 = vadd.f32 %v677, %v756
      %v758 = vpop.f32.mrf.mxu0
      %v759 = vadd.f32 %v677, %v758
      %760 = vmatmul.bf16.gmra.mxu0 %v654
      %v761 = vpop.f32.mrf.mxu0
      %v762 = vadd.f32 %v677, %v761
      %v763 = vpop.f32.mrf.mxu0
      %v764 = vadd.f32 %v677, %v763
      %765 = vmatmul.bf16.gmra.mxu0 %v655
      %v766 = vpop.f32.mrf.mxu0
      %v767 = vadd.f32 %v677, %v766
      %v768 = vpop.f32.mrf.mxu0
      %v769 = vadd.f32 %v677, %v768
      %770 = vmatmul.bf16.gmra.mxu0 %v656
      %v771 = vpop.f32.mrf.mxu0
      %v772 = vadd.f32 %v677, %v771
      %v773 = vpop.f32.mrf.mxu0
      %v774 = vadd.f32 %v677, %v773
      %775 = vmatmul.bf16.gmra.mxu0 %v657
      %v776 = vpop.f32.mrf.mxu0
      %v777 = vadd.f32 %v677, %v776
      %v778 = vpop.f32.mrf.mxu0
      %v779 = vadd.f32 %v677, %v778
      %780 = vmatmul.bf16.gmra.mxu0 %v658
      %v781 = vpop.f32.mrf.mxu0
      %v782 = vadd.f32 %v677, %v781
      %v783 = vpop.f32.mrf.mxu0
      %784 = vdwg.mxu0
      %v785 = vmax.f32 %v737, 0.0
      %v786 = vmax.f32 %v739, 0.0
      %v787 = vmax.f32 %v742, 0.0
      %v788 = vmax.f32 %v744, 0.0
      %v789 = vmax.f32 %v747, 0.0
      %v790 = vmax.f32 %v749, 0.0
      %v791 = vmax.f32 %v752, 0.0
      %v792 = vmax.f32 %v754, 0.0
      %v793 = vmax.f32 %v757, 0.0
      %v794 = vmax.f32 %v759, 0.0
      %v795 = vmax.f32 %v762, 0.0
      %v796 = vmax.f32 %v764, 0.0
      %v797 = vmax.f32 %v767, 0.0
      %v798 = vmax.f32 %v769, 0.0
      %v799 = vmax.f32 %v772, 0.0
      %v800 = vmax.f32 %v774, 0.0
      %v801 = vmax.f32 %v777, 0.0
      %v802 = vmax.f32 %v779, 0.0
      %v803 = vmax.f32 %v782, 0.0
      %v804 = vpack.c.bf16 %v786, %v785
      %v805 = vpack.c.bf16 %v788, %v787
      %v806 = vpack.c.bf16 %v790, %v789
      %v807 = vpack.c.bf16 %v792, %v791
      %v808 = vpack.c.bf16 %v794, %v793
      %v809 = vpack.c.bf16 %v796, %v795
      %v810 = vpack.c.bf16 %v798, %v797
      %v811 = vpack.c.bf16 %v800, %v799
      %v812 = vpack.c.bf16 %v802, %v801
      %v813 = vpack.c.bf16 %v803, %v803
      %v814 = vld [vmem:[%s7] sm:$0xf]
      %v815 = vld [vmem:[%s7 + $0x4] sm:$0xf]
      %v816 = vld [vmem:[%s7 + $0x8] sm:$0xf]
      %v817 = vld [vmem:[%s7 + $0xc] sm:$0xf]
      %v818 = vld [vmem:[%s7 + $0x10] sm:$0xf]
      %v819 = vld [vmem:[%s7 + $0x14] sm:$0xf]
      %v820 = vld [vmem:[%s7 + $0x18] sm:$0xf]
      %v821 = vld [vmem:[%s7 + $0x1c] sm:$0xf]
      %v822 = vld [vmem:[%s7 + $0x20] sm:$0xf]
      %v823 = vld [vmem:[%s7 + $0x24] sm:$0xf]
      %v824 = vld [vmem:[%s7 + $0x28] sm:$0xf]
      %v825 = vld [vmem:[%s7 + $0x2c] sm:$0xf]
      %v826 = vld [vmem:[%s7 + $0x30] sm:$0xf]
      %v827 = vld [vmem:[%s7 + $0x34] sm:$0xf]
      %v828 = vld [vmem:[%s7 + $0x38] sm:$0xf]
      %v829 = vld [vmem:[%s7 + $0x3c] sm:$0xf]
      %v830 = vld [vmem:[%s8] sm:$0x1]
      %v832 = vperm.slane %v830, 0
      %v850 = vunpack.c.l.b16 %v814
      %v851 = vunpack.c.l.b16 %v815
      %v852 = vunpack.c.l.b16 %v816
      %v853 = vunpack.c.l.b16 %v817
      %v854 = vunpack.c.l.b16 %v818
      %v855 = vunpack.c.l.b16 %v819
      %v856 = vunpack.c.l.b16 %v820
      %v857 = vunpack.c.l.b16 %v821
      %v858 = vunpack.c.l.b16 %v822
      %v859 = vunpack.c.l.b16 %v823
      %v860 = vunpack.c.l.b16 %v824
      %v861 = vunpack.c.l.b16 %v825
      %v862 = vunpack.c.l.b16 %v826
      %v863 = vunpack.c.l.b16 %v827
      %v864 = vunpack.c.l.b16 %v828
      %v865 = vunpack.c.l.b16 %v829
      %v866 = vpack.c.b16 %v851, %v850
      %v867 = vpack.c.b16 %v853, %v852
      %v868 = vpack.c.b16 %v855, %v854
      %v869 = vpack.c.b16 %v857, %v856
      %v870 = vpack.c.b16 %v859, %v858
      %v871 = vpack.c.b16 %v861, %v860
      %v872 = vpack.c.b16 %v863, %v862
      %v873 = vpack.c.b16 %v865, %v864
      %882 = vmatpush.bf16.msra.mxu0 %v873
      %883 = vmatpush.bf16.msra.mxu0 %v872
      %884 = vmatpush.bf16.msra.mxu0 %v871
      %885 = vmatpush.bf16.msra.mxu0 %v870
      %886 = vmatpush.bf16.msra.mxu0 %v869
      %887 = vmatpush.bf16.msra.mxu0 %v868
      %888 = vmatpush.bf16.msra.mxu0 %v867
      %889 = vmatpush.bf16.msra.mxu0 %v866
      %890 = vmatmul.bf16.gmra.mxu0 %v804
      %v891 = vpop.f32.mrf.mxu0
      %v892 = vadd.f32 %v832, %v891
      %v893 = vpop.f32.mrf.mxu0
      %v894 = vadd.f32 %v832, %v893
      %895 = vmatmul.bf16.gmra.mxu0 %v805
      %v896 = vpop.f32.mrf.mxu0
      %v897 = vadd.f32 %v832, %v896
      %v898 = vpop.f32.mrf.mxu0
      %v899 = vadd.f32 %v832, %v898
      %900 = vmatmul.bf16.gmra.mxu0 %v806
      %v901 = vpop.f32.mrf.mxu0
      %v902 = vadd.f32 %v832, %v901
      %v903 = vpop.f32.mrf.mxu0
      %v904 = vadd.f32 %v832, %v903
      %905 = vmatmul.bf16.gmra.mxu0 %v807
      %v906 = vpop.f32.mrf.mxu0
      %v907 = vadd.f32 %v832, %v906
      %v908 = vpop.f32.mrf.mxu0
      %v909 = vadd.f32 %v832, %v908
      %910 = vmatmul.bf16.gmra.mxu0 %v808
      %v911 = vpop.f32.mrf.mxu0
      %v912 = vadd.f32 %v832, %v911
      %v913 = vpop.f32.mrf.mxu0
      %v914 = vadd.f32 %v832, %v913
      %915 = vmatmul.bf16.gmra.mxu0 %v809
      %v916 = vpop.f32.mrf.mxu0
      %v917 = vadd.f32 %v832, %v916
      %v918 = vpop.f32.mrf.mxu0
      %v919 = vadd.f32 %v832, %v918
      %920 = vmatmul.bf16.gmra.mxu0 %v810
      %v921 = vpop.f32.mrf.mxu0
      %v922 = vadd.f32 %v832, %v921
      %v923 = vpop.f32.mrf.mxu0
      %v924 = vadd.f32 %v832, %v923
      %925 = vmatmul.bf16.gmra.mxu0 %v811
      %v926 = vpop.f32.mrf.mxu0
      %v927 = vadd.f32 %v832, %v926
      %v928 = vpop.f32.mrf.mxu0
      %v929 = vadd.f32 %v832, %v928
      %930 = vmatmul.bf16.gmra.mxu0 %v812
      %v931 = vpop.f32.mrf.mxu0
      %v932 = vadd.f32 %v832, %v931
      %v933 = vpop.f32.mrf.mxu0
      %v934 = vadd.f32 %v832, %v933
      %935 = vmatmul.bf16.gmra.mxu0 %v813
      %v936 = vpop.f32.mrf.mxu0
      %v937 = vadd.f32 %v832, %v936
      %v938 = vpop.f32.mrf.mxu0
      %939 = vdwg.mxu0
      %940 = vmax.xlane.f32.xlu0 %v892
      %v941 = vpop.xlane.xlu0 %940
      %942 = vmax.xlane.f32.xlu0 %v894
      %v943 = vpop.xlane.xlu0 %942
      %944 = vmax.xlane.f32.xlu0 %v897
      %v945 = vpop.xlane.xlu0 %944
      %946 = vmax.xlane.f32.xlu0 %v899
      %v947 = vpop.xlane.xlu0 %946
      %948 = vmax.xlane.f32.xlu0 %v902
      %v949 = vpop.xlane.xlu0 %948
      %950 = vmax.xlane.f32.xlu0 %v904
      %v951 = vpop.xlane.xlu0 %950
      %952 = vmax.xlane.f32.xlu0 %v907
      %v953 = vpop.xlane.xlu0 %952
      %954 = vmax.xlane.f32.xlu0 %v909
      %v955 = vpop.xlane.xlu0 %954
      %956 = vmax.xlane.f32.xlu0 %v912
      %v957 = vpop.xlane.xlu0 %956
      %958 = vmax.xlane.f32.xlu0 %v914
      %v959 = vpop.xlane.xlu0 %958
      %960 = vmax.xlane.f32.xlu0 %v917
      %v961 = vpop.xlane.xlu0 %960
      %962 = vmax.xlane.f32.xlu0 %v919
      %v963 = vpop.xlane.xlu0 %962
      %964 = vmax.xlane.f32.xlu0 %v922
      %v965 = vpop.xlane.xlu0 %964
      %966 = vmax.xlane.f32.xlu0 %v924
      %v967 = vpop.xlane.xlu0 %966
      %968 = vmax.xlane.f32.xlu0 %v927
      %v969 = vpop.xlane.xlu0 %968
      %970 = vmax.xlane.f32.xlu0 %v929
      %v971 = vpop.xlane.xlu0 %970
      %972 = vmax.xlane.f32.xlu0 %v932
      %v973 = vpop.xlane.xlu0 %972
      %974 = vmax.xlane.f32.xlu0 %v934
      %v975 = vpop.xlane.xlu0 %974
      %976 = vmax.xlane.f32.xlu0 %v937
      %v977 = vpop.xlane.xlu0 %976
      %v978 = vsub.f32 %v892, %v941
      %v979 = vsub.f32 %v894, %v943
      %v980 = vsub.f32 %v897, %v945
      %v981 = vsub.f32 %v899, %v947
      %v982 = vsub.f32 %v902, %v949
      %v983 = vsub.f32 %v904, %v951
      %v984 = vsub.f32 %v907, %v953
      %v985 = vsub.f32 %v909, %v955
      %v986 = vsub.f32 %v912, %v957
      %v987 = vsub.f32 %v914, %v959
      %v988 = vsub.f32 %v917, %v961
      %v989 = vsub.f32 %v919, %v963
      %v990 = vsub.f32 %v922, %v965
      %v991 = vsub.f32 %v924, %v967
      %v992 = vsub.f32 %v927, %v969
      %v993 = vsub.f32 %v929, %v971
      %v994 = vsub.f32 %v932, %v973
      %v995 = vsub.f32 %v934, %v975
      %v996 = vsub.f32 %v937, %v977
      %v997 = vmul.f32 %v978, 1.442695
      %v998 = vpow.pop %v997
      %v999 = vmul.f32 %v979, 1.442695
      %v1000 = vpow.pop %v999
      %v1001 = vmul.f32 %v980, 1.442695
      %v1002 = vpow.pop %v1001
      %v1003 = vmul.f32 %v981, 1.442695
      %v1004 = vpow.pop %v1003
      %v1005 = vmul.f32 %v982, 1.442695
      %v1006 = vpow.pop %v1005
      %v1007 = vmul.f32 %v983, 1.442695
      %v1008 = vpow.pop %v1007
      %v1009 = vmul.f32 %v984, 1.442695
      %v1010 = vpow.pop %v1009
      %v1011 = vmul.f32 %v985, 1.442695
      %v1012 = vpow.pop %v1011
      %v1013 = vmul.f32 %v986, 1.442695
      %v1014 = vpow.pop %v1013
      %v1015 = vmul.f32 %v987, 1.442695
      %v1016 = vpow.pop %v1015
      %v1017 = vmul.f32 %v988, 1.442695
      %v1018 = vpow.pop %v1017
      %v1019 = vmul.f32 %v989, 1.442695
      %v1020 = vpow.pop %v1019
      %v1021 = vmul.f32 %v990, 1.442695
      %v1022 = vpow.pop %v1021
      %v1023 = vmul.f32 %v991, 1.442695
      %v1024 = vpow.pop %v1023
      %v1025 = vmul.f32 %v992, 1.442695
      %v1026 = vpow.pop %v1025
      %v1027 = vmul.f32 %v993, 1.442695
      %v1028 = vpow.pop %v1027
      %v1029 = vmul.f32 %v994, 1.442695
      %v1030 = vpow.pop %v1029
      %v1031 = vmul.f32 %v995, 1.442695
      %v1032 = vpow.pop %v1031
      %v1033 = vmul.f32 %v996, 1.442695
      %v1034 = vpow.pop %v1033
      %1035 = vadd.xlane.f32.xlu0 %v998
      %v1036 = vpop.xlane.xlu0 %1035
      %1037 = vadd.xlane.f32.xlu0 %v1000
      %v1038 = vpop.xlane.xlu0 %1037
      %1039 = vadd.xlane.f32.xlu0 %v1002
      %v1040 = vpop.xlane.xlu0 %1039
      %1041 = vadd.xlane.f32.xlu0 %v1004
      %v1042 = vpop.xlane.xlu0 %1041
      %1043 = vadd.xlane.f32.xlu0 %v1006
      %v1044 = vpop.xlane.xlu0 %1043
      %1045 = vadd.xlane.f32.xlu0 %v1008
      %v1046 = vpop.xlane.xlu0 %1045
      %1047 = vadd.xlane.f32.xlu0 %v1010
      %v1048 = vpop.xlane.xlu0 %1047
      %1049 = vadd.xlane.f32.xlu0 %v1012
      %v1050 = vpop.xlane.xlu0 %1049
      %1051 = vadd.xlane.f32.xlu0 %v1014
      %v1052 = vpop.xlane.xlu0 %1051
      %1053 = vadd.xlane.f32.xlu0 %v1016
      %v1054 = vpop.xlane.xlu0 %1053
      %1055 = vadd.xlane.f32.xlu0 %v1018
      %v1056 = vpop.xlane.xlu0 %1055
      %1057 = vadd.xlane.f32.xlu0 %v1020
      %v1058 = vpop.xlane.xlu0 %1057
      %1059 = vadd.xlane.f32.xlu0 %v1022
      %v1060 = vpop.xlane.xlu0 %1059
      %1061 = vadd.xlane.f32.xlu0 %v1024
      %v1062 = vpop.xlane.xlu0 %1061
      %1063 = vadd.xlane.f32.xlu0 %v1026
      %v1064 = vpop.xlane.xlu0 %1063
      %1065 = vadd.xlane.f32.xlu0 %v1028
      %v1066 = vpop.xlane.xlu0 %1065
      %1067 = vadd.xlane.f32.xlu0 %v1030
      %v1068 = vpop.xlane.xlu0 %1067
      %1069 = vadd.xlane.f32.xlu0 %v1032
      %v1070 = vpop.xlane.xlu0 %1069
      %1071 = vadd.xlane.f32.xlu0 %v1034
      %v1072 = vpop.xlane.xlu0 %1071
      %v1073 = vrcp.pop %v1036
      %v1074 = vmul.f32 %v1036, %v1073
      %v1075 = vsub.f32 1.0, %v1074
      %v1076 = vmul.f32 %v1073, %v1075
      %v1077 = vadd.f32 %v1073, %v1076
      %vm1078 = vweird.f32 %v1036
      %vm1079 = vweird.f32 %v1073
      %vm1080 = vmor %vm1078, %vm1079
      %v1081 = vsel %vm1080, %v1073, %v1077
      %v1082 = vand.u32 2147483647, %v1036
      %vm1083 = vcmp.eq.f32.partialorder %v1082, 8.507059e+37
      %v1084 = vand.u32 %v1036, 2147483648
      %v1085 = vor.u32 1.1754944e-38, %v1084
      %v1086 = vsel %vm1083, %v1085, %v1081
      %v1087 = vmul.f32 %v998, %v1086
      %v1088 = vrcp.pop %v1038
      %v1089 = vmul.f32 %v1038, %v1088
      %v1090 = vsub.f32 1.0, %v1089
      %v1091 = vmul.f32 %v1088, %v1090
      %v1092 = vadd.f32 %v1088, %v1091
      %vm1093 = vweird.f32 %v1038
      %vm1094 = vweird.f32 %v1088
      %vm1095 = vmor %vm1093, %vm1094
      %v1096 = vsel %vm1095, %v1088, %v1092
      %v1097 = vand.u32 2147483647, %v1038
      %vm1098 = vcmp.eq.f32.partialorder %v1097, 8.507059e+37
      %v1099 = vand.u32 %v1038, 2147483648
      %v1100 = vor.u32 1.1754944e-38, %v1099
      %v1101 = vsel %vm1098, %v1100, %v1096
      %v1102 = vmul.f32 %v1000, %v1101
      %v1103 = vrcp.pop %v1040
      %v1104 = vmul.f32 %v1040, %v1103
      %v1105 = vsub.f32 1.0, %v1104
      %v1106 = vmul.f32 %v1103, %v1105
      %v1107 = vadd.f32 %v1103, %v1106
      %vm1108 = vweird.f32 %v1040
      %vm1109 = vweird.f32 %v1103
      %vm1110 = vmor %vm1108, %vm1109
      %v1111 = vsel %vm1110, %v1103, %v1107
      %v1112 = vand.u32 2147483647, %v1040
      %vm1113 = vcmp.eq.f32.partialorder %v1112, 8.507059e+37
      %v1114 = vand.u32 %v1040, 2147483648
      %v1115 = vor.u32 1.1754944e-38, %v1114
      %v1116 = vsel %vm1113, %v1115, %v1111
      %v1117 = vmul.f32 %v1002, %v1116
      %v1118 = vrcp.pop %v1042
      %v1119 = vmul.f32 %v1042, %v1118
      %v1120 = vsub.f32 1.0, %v1119
      %v1121 = vmul.f32 %v1118, %v1120
      %v1122 = vadd.f32 %v1118, %v1121
      %vm1123 = vweird.f32 %v1042
      %vm1124 = vweird.f32 %v1118
      %vm1125 = vmor %vm1123, %vm1124
      %v1126 = vsel %vm1125, %v1118, %v1122
      %v1127 = vand.u32 2147483647, %v1042
      %vm1128 = vcmp.eq.f32.partialorder %v1127, 8.507059e+37
      %v1129 = vand.u32 %v1042, 2147483648
      %v1130 = vor.u32 1.1754944e-38, %v1129
      %v1131 = vsel %vm1128, %v1130, %v1126
      %v1132 = vmul.f32 %v1004, %v1131
      %v1133 = vrcp.pop %v1044
      %v1134 = vmul.f32 %v1044, %v1133
      %v1135 = vsub.f32 1.0, %v1134
      %v1136 = vmul.f32 %v1133, %v1135
      %v1137 = vadd.f32 %v1133, %v1136
      %vm1138 = vweird.f32 %v1044
      %vm1139 = vweird.f32 %v1133
      %vm1140 = vmor %vm1138, %vm1139
      %v1141 = vsel %vm1140, %v1133, %v1137
      %v1142 = vand.u32 2147483647, %v1044
      %vm1143 = vcmp.eq.f32.partialorder %v1142, 8.507059e+37
      %v1144 = vand.u32 %v1044, 2147483648
      %v1145 = vor.u32 1.1754944e-38, %v1144
      %v1146 = vsel %vm1143, %v1145, %v1141
      %v1147 = vmul.f32 %v1006, %v1146
      %v1148 = vrcp.pop %v1046
      %v1149 = vmul.f32 %v1046, %v1148
      %v1150 = vsub.f32 1.0, %v1149
      %v1151 = vmul.f32 %v1148, %v1150
      %v1152 = vadd.f32 %v1148, %v1151
      %vm1153 = vweird.f32 %v1046
      %vm1154 = vweird.f32 %v1148
      %vm1155 = vmor %vm1153, %vm1154
      %v1156 = vsel %vm1155, %v1148, %v1152
      %v1157 = vand.u32 2147483647, %v1046
      %vm1158 = vcmp.eq.f32.partialorder %v1157, 8.507059e+37
      %v1159 = vand.u32 %v1046, 2147483648
      %v1160 = vor.u32 1.1754944e-38, %v1159
      %v1161 = vsel %vm1158, %v1160, %v1156
      %v1162 = vmul.f32 %v1008, %v1161
      %v1163 = vrcp.pop %v1048
      %v1164 = vmul.f32 %v1048, %v1163
      %v1165 = vsub.f32 1.0, %v1164
      %v1166 = vmul.f32 %v1163, %v1165
      %v1167 = vadd.f32 %v1163, %v1166
      %vm1168 = vweird.f32 %v1048
      %vm1169 = vweird.f32 %v1163
      %vm1170 = vmor %vm1168, %vm1169
      %v1171 = vsel %vm1170, %v1163, %v1167
      %v1172 = vand.u32 2147483647, %v1048
      %vm1173 = vcmp.eq.f32.partialorder %v1172, 8.507059e+37
      %v1174 = vand.u32 %v1048, 2147483648
      %v1175 = vor.u32 1.1754944e-38, %v1174
      %v1176 = vsel %vm1173, %v1175, %v1171
      %v1177 = vmul.f32 %v1010, %v1176
      %v1178 = vrcp.pop %v1050
      %v1179 = vmul.f32 %v1050, %v1178
      %v1180 = vsub.f32 1.0, %v1179
      %v1181 = vmul.f32 %v1178, %v1180
      %v1182 = vadd.f32 %v1178, %v1181
      %vm1183 = vweird.f32 %v1050
      %vm1184 = vweird.f32 %v1178
      %vm1185 = vmor %vm1183, %vm1184
      %v1186 = vsel %vm1185, %v1178, %v1182
      %v1187 = vand.u32 2147483647, %v1050
      %vm1188 = vcmp.eq.f32.partialorder %v1187, 8.507059e+37
      %v1189 = vand.u32 %v1050, 2147483648
      %v1190 = vor.u32 1.1754944e-38, %v1189
      %v1191 = vsel %vm1188, %v1190, %v1186
      %v1192 = vmul.f32 %v1012, %v1191
      %v1193 = vrcp.pop %v1052
      %v1194 = vmul.f32 %v1052, %v1193
      %v1195 = vsub.f32 1.0, %v1194
      %v1196 = vmul.f32 %v1193, %v1195
      %v1197 = vadd.f32 %v1193, %v1196
      %vm1198 = vweird.f32 %v1052
      %vm1199 = vweird.f32 %v1193
      %vm1200 = vmor %vm1198, %vm1199
      %v1201 = vsel %vm1200, %v1193, %v1197
      %v1202 = vand.u32 2147483647, %v1052
      %vm1203 = vcmp.eq.f32.partialorder %v1202, 8.507059e+37
      %v1204 = vand.u32 %v1052, 2147483648
      %v1205 = vor.u32 1.1754944e-38, %v1204
      %v1206 = vsel %vm1203, %v1205, %v1201
      %v1207 = vmul.f32 %v1014, %v1206
      %v1208 = vrcp.pop %v1054
      %v1209 = vmul.f32 %v1054, %v1208
      %v1210 = vsub.f32 1.0, %v1209
      %v1211 = vmul.f32 %v1208, %v1210
      %v1212 = vadd.f32 %v1208, %v1211
      %vm1213 = vweird.f32 %v1054
      %vm1214 = vweird.f32 %v1208
      %vm1215 = vmor %vm1213, %vm1214
      %v1216 = vsel %vm1215, %v1208, %v1212
      %v1217 = vand.u32 2147483647, %v1054
      %vm1218 = vcmp.eq.f32.partialorder %v1217, 8.507059e+37
      %v1219 = vand.u32 %v1054, 2147483648
      %v1220 = vor.u32 1.1754944e-38, %v1219
      %v1221 = vsel %vm1218, %v1220, %v1216
      %v1222 = vmul.f32 %v1016, %v1221
      %v1223 = vrcp.pop %v1056
      %v1224 = vmul.f32 %v1056, %v1223
      %v1225 = vsub.f32 1.0, %v1224
      %v1226 = vmul.f32 %v1223, %v1225
      %v1227 = vadd.f32 %v1223, %v1226
      %vm1228 = vweird.f32 %v1056
      %vm1229 = vweird.f32 %v1223
      %vm1230 = vmor %vm1228, %vm1229
      %v1231 = vsel %vm1230, %v1223, %v1227
      %v1232 = vand.u32 2147483647, %v1056
      %vm1233 = vcmp.eq.f32.partialorder %v1232, 8.507059e+37
      %v1234 = vand.u32 %v1056, 2147483648
      %v1235 = vor.u32 1.1754944e-38, %v1234
      %v1236 = vsel %vm1233, %v1235, %v1231
      %v1237 = vmul.f32 %v1018, %v1236
      %v1238 = vrcp.pop %v1058
      %v1239 = vmul.f32 %v1058, %v1238
      %v1240 = vsub.f32 1.0, %v1239
      %v1241 = vmul.f32 %v1238, %v1240
      %v1242 = vadd.f32 %v1238, %v1241
      %vm1243 = vweird.f32 %v1058
      %vm1244 = vweird.f32 %v1238
      %vm1245 = vmor %vm1243, %vm1244
      %v1246 = vsel %vm1245, %v1238, %v1242
      %v1247 = vand.u32 2147483647, %v1058
      %vm1248 = vcmp.eq.f32.partialorder %v1247, 8.507059e+37
      %v1249 = vand.u32 %v1058, 2147483648
      %v1250 = vor.u32 1.1754944e-38, %v1249
      %v1251 = vsel %vm1248, %v1250, %v1246
      %v1252 = vmul.f32 %v1020, %v1251
      %v1253 = vrcp.pop %v1060
      %v1254 = vmul.f32 %v1060, %v1253
      %v1255 = vsub.f32 1.0, %v1254
      %v1256 = vmul.f32 %v1253, %v1255
      %v1257 = vadd.f32 %v1253, %v1256
      %vm1258 = vweird.f32 %v1060
      %vm1259 = vweird.f32 %v1253
      %vm1260 = vmor %vm1258, %vm1259
      %v1261 = vsel %vm1260, %v1253, %v1257
      %v1262 = vand.u32 2147483647, %v1060
      %vm1263 = vcmp.eq.f32.partialorder %v1262, 8.507059e+37
      %v1264 = vand.u32 %v1060, 2147483648
      %v1265 = vor.u32 1.1754944e-38, %v1264
      %v1266 = vsel %vm1263, %v1265, %v1261
      %v1267 = vmul.f32 %v1022, %v1266
      %v1268 = vrcp.pop %v1062
      %v1269 = vmul.f32 %v1062, %v1268
      %v1270 = vsub.f32 1.0, %v1269
      %v1271 = vmul.f32 %v1268, %v1270
      %v1272 = vadd.f32 %v1268, %v1271
      %vm1273 = vweird.f32 %v1062
      %vm1274 = vweird.f32 %v1268
      %vm1275 = vmor %vm1273, %vm1274
      %v1276 = vsel %vm1275, %v1268, %v1272
      %v1277 = vand.u32 2147483647, %v1062
      %vm1278 = vcmp.eq.f32.partialorder %v1277, 8.507059e+37
      %v1279 = vand.u32 %v1062, 2147483648
      %v1280 = vor.u32 1.1754944e-38, %v1279
      %v1281 = vsel %vm1278, %v1280, %v1276
      %v1282 = vmul.f32 %v1024, %v1281
      %v1283 = vrcp.pop %v1064
      %v1284 = vmul.f32 %v1064, %v1283
      %v1285 = vsub.f32 1.0, %v1284
      %v1286 = vmul.f32 %v1283, %v1285
      %v1287 = vadd.f32 %v1283, %v1286
      %vm1288 = vweird.f32 %v1064
      %vm1289 = vweird.f32 %v1283
      %vm1290 = vmor %vm1288, %vm1289
      %v1291 = vsel %vm1290, %v1283, %v1287
      %v1292 = vand.u32 2147483647, %v1064
      %vm1293 = vcmp.eq.f32.partialorder %v1292, 8.507059e+37
      %v1294 = vand.u32 %v1064, 2147483648
      %v1295 = vor.u32 1.1754944e-38, %v1294
      %v1296 = vsel %vm1293, %v1295, %v1291
      %v1297 = vmul.f32 %v1026, %v1296
      %v1298 = vrcp.pop %v1066
      %v1299 = vmul.f32 %v1066, %v1298
      %v1300 = vsub.f32 1.0, %v1299
      %v1301 = vmul.f32 %v1298, %v1300
      %v1302 = vadd.f32 %v1298, %v1301
      %vm1303 = vweird.f32 %v1066
      %vm1304 = vweird.f32 %v1298
      %vm1305 = vmor %vm1303, %vm1304
      %v1306 = vsel %vm1305, %v1298, %v1302
      %v1307 = vand.u32 2147483647, %v1066
      %vm1308 = vcmp.eq.f32.partialorder %v1307, 8.507059e+37
      %v1309 = vand.u32 %v1066, 2147483648
      %v1310 = vor.u32 1.1754944e-38, %v1309
      %v1311 = vsel %vm1308, %v1310, %v1306
      %v1312 = vmul.f32 %v1028, %v1311
      %v1313 = vrcp.pop %v1068
      %v1314 = vmul.f32 %v1068, %v1313
      %v1315 = vsub.f32 1.0, %v1314
      %v1316 = vmul.f32 %v1313, %v1315
      %v1317 = vadd.f32 %v1313, %v1316
      %vm1318 = vweird.f32 %v1068
      %vm1319 = vweird.f32 %v1313
      %vm1320 = vmor %vm1318, %vm1319
      %v1321 = vsel %vm1320, %v1313, %v1317
      %v1322 = vand.u32 2147483647, %v1068
      %vm1323 = vcmp.eq.f32.partialorder %v1322, 8.507059e+37
      %v1324 = vand.u32 %v1068, 2147483648
      %v1325 = vor.u32 1.1754944e-38, %v1324
      %v1326 = vsel %vm1323, %v1325, %v1321
      %v1327 = vmul.f32 %v1030, %v1326
      %v1328 = vrcp.pop %v1070
      %v1329 = vmul.f32 %v1070, %v1328
      %v1330 = vsub.f32 1.0, %v1329
      %v1331 = vmul.f32 %v1328, %v1330
      %v1332 = vadd.f32 %v1328, %v1331
      %vm1333 = vweird.f32 %v1070
      %vm1334 = vweird.f32 %v1328
      %vm1335 = vmor %vm1333, %vm1334
      %v1336 = vsel %vm1335, %v1328, %v1332
      %v1337 = vand.u32 2147483647, %v1070
      %vm1338 = vcmp.eq.f32.partialorder %v1337, 8.507059e+37
      %v1339 = vand.u32 %v1070, 2147483648
      %v1340 = vor.u32 1.1754944e-38, %v1339
      %v1341 = vsel %vm1338, %v1340, %v1336
      %v1342 = vmul.f32 %v1032, %v1341
      %v1343 = vrcp.pop %v1072
      %v1344 = vmul.f32 %v1072, %v1343
      %v1345 = vsub.f32 1.0, %v1344
      %v1346 = vmul.f32 %v1343, %v1345
      %v1347 = vadd.f32 %v1343, %v1346
      %vm1348 = vweird.f32 %v1072
      %vm1349 = vweird.f32 %v1343
      %vm1350 = vmor %vm1348, %vm1349
      %v1351 = vsel %vm1350, %v1343, %v1347
      %v1352 = vand.u32 2147483647, %v1072
      %vm1353 = vcmp.eq.f32.partialorder %v1352, 8.507059e+37
      %v1354 = vand.u32 %v1072, 2147483648
      %v1355 = vor.u32 1.1754944e-38, %v1354
      %v1356 = vsel %vm1353, %v1355, %v1351
      %v1357 = vmul.f32 %v1034, %v1356
      %vm1358 = vcmask 64512
      %1359 = vst.msk [vmem:[%s334] sm:$0xff] %vm1358, %v1087
      %1360 = vst.msk [vmem:[%s334 + $0x8] sm:$0xff] %vm1358, %v1102
      %1361 = vst.msk [vmem:[%s334 + $0x10] sm:$0xff] %vm1358, %v1117
      %1362 = vst.msk [vmem:[%s334 + $0x18] sm:$0xff] %vm1358, %v1132
      %1363 = vst.msk [vmem:[%s334 + $0x20] sm:$0xff] %vm1358, %v1147
      %1364 = vst.msk [vmem:[%s334 + $0x28] sm:$0xff] %vm1358, %v1162
      %1365 = vst.msk [vmem:[%s334 + $0x30] sm:$0xff] %vm1358, %v1177
      %1366 = vst.msk [vmem:[%s334 + $0x38] sm:$0xff] %vm1358, %v1192
      %1367 = vst.msk [vmem:[%s334 + $0x40] sm:$0xff] %vm1358, %v1207
      %1368 = vst.msk [vmem:[%s334 + $0x48] sm:$0xff] %vm1358, %v1222
      %1369 = vst.msk [vmem:[%s334 + $0x50] sm:$0xff] %vm1358, %v1237
      %1370 = vst.msk [vmem:[%s334 + $0x58] sm:$0xff] %vm1358, %v1252
      %1371 = vst.msk [vmem:[%s334 + $0x60] sm:$0xff] %vm1358, %v1267
      %1372 = vst.msk [vmem:[%s334 + $0x68] sm:$0xff] %vm1358, %v1282
      %1373 = vst.msk [vmem:[%s334 + $0x70] sm:$0xff] %vm1358, %v1297
      %1374 = vst.msk [vmem:[%s334 + $0x78] sm:$0xff] %vm1358, %v1312
      %1375 = vst.msk [vmem:[%s334 + $0x80] sm:$0xff] %vm1358, %v1327
      %1376 = vst.msk [vmem:[%s334 + $0x88] sm:$0xff] %vm1358, %v1342
      %1377 = vst.msk [vmem:[%s334 + $0x90] sm:$0xff] %vm1358, %v1357
      %s1378 = smul.u32 19, %s20
      %p1379 = scmp.lt.s32.totalorder %s1378, 37
      %s1380 = scalar_select %p1379, %s1378, 37
      %s1381 = smul.addr %s1380, 8
      %s1382 = scalar_lea.vmem %s9, %s1381
      // Predicated region
      $region57: #{tpu_custom_call.1} parent=55 // pred_check
        %p1383 = pneg %p232
      $region58: #{tpu_custom_call.1} parent=55 // pred_check_branch
        %1385 = sbr.rel (%p1383) target = $region60
      $region59: #{tpu_custom_call.1} parent=55 // pred_region
        %s1386 = smul.u32 19, %s20
      $region60: #{tpu_custom_call.1} parent=55 // pred_fallthru
        _
    $region56: #{tpu_custom_call.1} parent=5 // pred_fallthru
      _
    %p1387 = scmp.le.s32.totalorder 2, %s15
    // Predicated region
    $region61: #{tpu_custom_call.1} parent=5 // pred_check
      %p1388 = pneg %p1387
    $region62: #{tpu_custom_call.1} parent=5 // pred_check_branch
      %1390 = sbr.rel (%p1388) target = $region64
    $region63: #{tpu_custom_call.1} parent=5 // pred_region
      %s1391 = ssub.s32 %s15, 2
      // Predicated region
      $region65: #{tpu_custom_call.1} parent=63 // pred_check
        %p1392 = pneg %p238
      $region66: #{tpu_custom_call.1} parent=63 // pred_check_branch
        %1394 = sbr.rel (%p1392) target = $region68
      $region67: #{tpu_custom_call.1} parent=63 // pred_region
        %s1395 = smul.u32 19, %s21
        %p1396 = scmp.lt.s32.totalorder %s1395, 37
        %s1397 = scalar_select %p1396, %s1395, 37
        %s1398 = smul.addr %s1397, 8
        %s1399 = scalar_lea.vmem %s9, %s1398
      $region68: #{tpu_custom_call.1} parent=63 // pred_fallthru
        _
    $region64: #{tpu_custom_call.1} parent=5 // pred_fallthru
      _
  $region6: #{tpu_custom_call.1} parent=0 // loop_footer
    %s19 = sadd.s32 1, %s15
  $region7: #{tpu_custom_call.1} parent=0 // loop_footer_branch
    %14 = sbr.rel target = $region3
  $region8: #{tpu_custom_call.1} parent=0 // loop_exit
    _

</llo_original>
